<compile_context>
chip_gen: v7x
topology: tpu7x:2x2x1
jax: 0.10.0
libtpu: 0.0.40
codegen_flags: <defaults>
</compile_context>

<pallas_src>
import functools

import jax
import jax.numpy as jnp
from jax import lax
from jax.experimental import pallas as pl
from jax.experimental.pallas import tpu as pltpu


def _round_up(x, m):
    return (x + m - 1) // m * m


def _sine_layer_kernel(x_ref, w_ref, o_ref, *, omega_0, is_res, tn):
    """One (row-tile, col-tile) block of: sin(omega_0 * x @ W.T) [+ x]."""
    x = x_ref[...]                                    # (tm, K_pad), f32 or bf16
    w = w_ref[...]                                    # (tn, K_pad)  PyTorch [out, in]
    # Contract x's K (dim 1) against w's K (dim 1): x @ w.T without materializing w.T.
    y = lax.dot_general(
        x, w,
        dimension_numbers=(((1,), (1,)), ((), ())),
        preferred_element_type=jnp.float32,           # MXU, f32 accumulation
    )                                                 # (tm, tn) f32
    s = jnp.sin(omega_0 * y)                          # elementwise in f32
    if is_res:
        # residual requires in_features == out_features (so K_pad == out_pad);
        # pick the x columns matching this output-column tile.
        j = pl.program_id(1)
        start = pl.multiple_of(j * tn, 128)
        xs = x_ref[:, pl.ds(start, tn)]
        s = s + xs.astype(jnp.float32)
    o_ref[...] = s.astype(o_ref.dtype)


def sine_layer(x, weight, *, omega_0=30.0, is_res=False, tm=512, tn=None,
               use_bf16=False):
    """SIREN SineLayer forward.

    x:      [N, in_features]              (caller flattens leading batch dims)
    weight: [out_features, in_features]   (PyTorch nn.Linear layout, NOT transposed)
    use_bf16: cast x/weight to bf16 for the matmul (f32 accumulation) — v6e/v7x perf.
    """
    N, in_f = x.shape
    out_f, in_f_w = weight.shape
    assert in_f == in_f_w, "weight must be [out_features, in_features]"
    if is_res:
        assert in_f == out_f, "residual path requires in_features == out_features"

    out_dtype = x.dtype
    mm_dtype = jnp.bfloat16 if use_bf16 else x.dtype
    bytes_el = jnp.dtype(mm_dtype).itemsize
    out_bytes_el = jnp.dtype(out_dtype).itemsize
    row_align = 16 if jnp.dtype(mm_dtype) == jnp.dtype(jnp.bfloat16) else 8

    # Lane-dense feature dims (multiples of 128).
    in_pad = _round_up(in_f, 128)
    out_pad = _round_up(out_f, 128)

    # Column tile: largest multiple of 128 dividing out_pad with weight tile <= ~8 MiB.
    if tn is None:
        n_lanes = out_pad // 128
        chosen = 1
        for c in range(n_lanes, 0, -1):
            if n_lanes % c == 0 and (c * 128) * in_pad * bytes_el <= 8 * 1024 * 1024:
                chosen = c
                break
        tn = chosen * 128
    assert tn % 128 == 0 and out_pad % tn == 0

    # Row tile: big by default, clamped to the (padded) problem size and VMEM budget.
    tm_eff = max(row_align, min(_round_up(tm, row_align), _round_up(N, row_align)))

    def _vmem_need(tm_e, tn_e):
        # double-buffered x tile + w tile + out tile
        return 2 * (tm_e * in_pad * bytes_el
                    + tn_e * in_pad * bytes_el
                    + tm_e * tn_e * out_bytes_el)

    while _vmem_need(tm_eff, tn) > 40 * 1024 * 1024 and tm_eff > 2 * row_align:
        tm_eff = max(row_align, _round_up(tm_eff // 2, row_align))

    N_pad = _round_up(N, tm_eff)

    # Zero-pad to aligned shapes (no-op copies are eliminated when already aligned).
    xp = x
    if (N_pad, in_pad) != (N, in_f):
        xp = jnp.pad(x, ((0, N_pad - N), (0, in_pad - in_f)))
    wp = weight
    if (out_pad, in_pad) != (out_f, in_f):
        wp = jnp.pad(weight, ((0, out_pad - out_f), (0, in_pad - in_f)))
    xp = xp.astype(mm_dtype)
    wp = wp.astype(mm_dtype)

    grid = (N_pad // tm_eff, out_pad // tn)

    kernel = functools.partial(_sine_layer_kernel, omega_0=float(omega_0),
                               is_res=is_res, tn=tn)

    cost = pl.CostEstimate(
        flops=2 * N_pad * in_pad * out_pad,
        transcendentals=N_pad * out_pad,
        bytes_accessed=(N_pad * in_pad * bytes_el
                        + out_pad * in_pad * bytes_el
                        + N_pad * out_pad * out_bytes_el),
    )

    vmem_limit = int(min(max(_vmem_need(tm_eff, tn) + 8 * 1024 * 1024,
                             32 * 1024 * 1024),
                         60 * 1024 * 1024))

    yp = pl.pallas_call(
        kernel,
        out_shape=jax.ShapeDtypeStruct((N_pad, out_pad), out_dtype),
        grid=grid,
        in_specs=[
            pl.BlockSpec((tm_eff, in_pad), lambda i, j: (i, 0)),   # row tile of x
            pl.BlockSpec((tn, in_pad), lambda i, j: (j, 0)),       # weight col tile ([out,in])
        ],
        out_specs=pl.BlockSpec((tm_eff, tn), lambda i, j: (i, j)),
        compiler_params=pltpu.CompilerParams(
            dimension_semantics=("parallel", "parallel"),
            vmem_limit_bytes=vmem_limit,
        ),
        cost_estimate=cost,
    )(xp, wp)

    if (N_pad, out_pad) != (N, out_f):
        yp = yp[:N, :out_f]
    return yp


def init_sine_weight(key, in_features, out_features, *, is_first, omega_0=30.0):
    """Deterministic SIREN init matching SineLayer.init_weights (PyTorch [out, in] layout)."""
    if is_first:
        bound = 1.0 / in_features
    else:
        bound = (6.0 / in_features) ** 0.5 / omega_0
    return jax.random.uniform(key, (out_features, in_features),
                              dtype=jnp.float32, minval=-bound, maxval=bound)


def _reference(x, weight, *, omega_0, is_res):
    y = jnp.sin(omega_0 * (x @ weight.T))
    return x + y if is_res else y


def _reference_bf16(x, weight, *, omega_0, is_res):
    xb = x.astype(jnp.bfloat16)
    wb = weight.astype(jnp.bfloat16)
    y = jnp.sin(omega_0 * jnp.dot(xb, wb.T, preferred_element_type=jnp.float32))
    return xb.astype(jnp.float32) + y if is_res else y


if __name__ == "__main__":
    key = jax.random.PRNGKey(0)
    k_x, k_w1, k_w2 = jax.random.split(key, 3)

    batch, seq, in_features, out_features = 2, 8, 32, 32
    omega_0 = 30.0

    # inputs: [batch, seq, in_features] -> flatten leading dims to rows
    x3 = jax.random.uniform(k_x, (batch, seq, in_features), dtype=jnp.float32,
                            minval=-1.0, maxval=1.0)
    x = x3.reshape(batch * seq, in_features)

    w1 = init_sine_weight(k_w1, in_features, out_features, is_first=True, omega_0=omega_0)
    w2 = init_sine_weight(k_w2, out_features, out_features, is_first=False, omega_0=omega_0)

    # --- f32 path: exact module semantics -----------------------------------
    y1 = sine_layer(x, w1, omega_0=omega_0, is_res=False)
    y2 = sine_layer(y1, w2, omega_0=omega_0, is_res=True)
    y2 = jax.block_until_ready(y2)

    r1 = _reference(x, w1, omega_0=omega_0, is_res=False)
    r2 = _reference(r1, w2, omega_0=omega_0, is_res=True)
    assert jnp.allclose(y1, r1, atol=1e-5, rtol=1e-5), "first-layer mismatch"
    assert jnp.allclose(y2, r2, atol=1e-5, rtol=1e-5), "res-layer mismatch"
    assert y2.reshape(batch, seq, out_features).shape == (batch, seq, out_features)

    # --- bf16-matmul perf variant (v6e/v7x): compare vs matching bf16 reference ---
    y1b = sine_layer(x, w1, omega_0=omega_0, is_res=False, use_bf16=True)
    y1b = jax.block_until_ready(y1b)
    r1b = _reference_bf16(x, w1, omega_0=omega_0, is_res=False)
    assert jnp.allclose(y1b, r1b, atol=1e-3, rtol=1e-3), "bf16-path mismatch"

    print("KERNEL_OK")
</pallas_src>

<mosaic_0001>
module attributes {stable_mosaic.version = 11 : i64} {
  func.func @_sine_layer_kernel(%arg0: i32, %arg1: i32, %arg2: memref<16x128xf32, #tpu.memory_space<vmem>>, %arg3: memref<128x128xf32, #tpu.memory_space<vmem>>, %arg4: memref<16x128xf32, #tpu.memory_space<vmem>>) attributes {dimension_semantics = [#tpu.dimension_semantics<parallel>, #tpu.dimension_semantics<parallel>], iteration_bounds = array<i64: 1, 1>, scalar_prefetch = 0 : i64, scratch_operands = 0 : i64, tpu.core_type = #tpu.core_type<tc>, window_params = [{transform_indices = @transform_0, window_bounds = array<i64: 16, 128>}, {transform_indices = @transform_1, window_bounds = array<i64: 128, 128>}, {transform_indices = @transform_2, window_bounds = array<i64: 16, 128>}]} {
    %c0 = arith.constant 0 : index
    %c0_0 = arith.constant 0 : index
    %0 = vector.load %arg2[%c0, %c0_0] : memref<16x128xf32, #tpu.memory_space<vmem>>, vector<16x128xf32>
    %c0_1 = arith.constant 0 : index
    %c0_2 = arith.constant 0 : index
    %1 = vector.load %arg3[%c0_1, %c0_2] : memref<128x128xf32, #tpu.memory_space<vmem>>, vector<128x128xf32>
    %cst = arith.constant dense<0.000000e+00> : vector<16x128xf32>
    %2 = tpu.matmul %0, %1, %cst {dimension_numbers = #tpu.dot_dimension_numbers<[1], [1], [0], [0], [0, 0, 1, 0], [], []>} : vector<16x128xf32>, vector<128x128xf32>, vector<16x128xf32> -> vector<16x128xf32>
    %cst_3 = arith.constant 3.000000e+01 : f32
    %3 = vector.broadcast %cst_3 : f32 to vector<16x128xf32>
    %4 = arith.mulf %3, %2 : vector<16x128xf32>
    %5 = math.sin %4 : vector<16x128xf32>
    %c0_4 = arith.constant 0 : index
    %c0_5 = arith.constant 0 : index
    %6 = vector.load %arg4[%c0_4, %c0_5] : memref<16x128xf32, #tpu.memory_space<vmem>>, vector<16x128xf32>
    tpu.vector_store %arg4[%c0_4, %c0_5], %5 {strides = array<i32>} : memref<16x128xf32, #tpu.memory_space<vmem>>, vector<16x128xf32>,
    return
  }
  func.func @transform_0(%arg0: i32, %arg1: i32) -> (i32, i32) {
    %c0_i32 = arith.constant 0 : i32
    %c0_i32_0 = arith.constant 0 : i32
    return %arg0, %c0_i32 : i32, i32
  }
  func.func @transform_1(%arg0: i32, %arg1: i32) -> (i32, i32) {
    %c0_i32 = arith.constant 0 : i32
    %c0_i32_0 = arith.constant 0 : i32
    return %arg1, %c0_i32 : i32, i32
  }
  func.func @transform_2(%arg0: i32, %arg1: i32) -> (i32, i32) {
    %c0_i32 = arith.constant 0 : i32
    return %arg0, %arg1 : i32, i32
  }
}

</mosaic_0001>

<llo_original>
// kernel: tpu_custom_call.1
$region0: #{tpu_custom_call.1}
  #allocation0 [shape = 'u32[]', space=smem, size = 0x4, offset = 0x4, fixed_abs, tag = 'smem constant byte address 0x4 - core index']
  #allocation1 [shape = 'u32[144,128]{1,0:T(1,128)}', space=vmem, size = 0x12000, scoped, tag = 'internal scratch']
  %s0 = inlined_call_operand.hbm [shape: f32[16,128], index: 0, kind: input, shape index: {}]
  %s1 = inlined_call_operand.hbm [shape: f32[128,128], index: 1, kind: input, shape index: {}]
  %s2 = inlined_call_operand.hbm [shape: f32[16,128], index: 2, kind: output, shape index: {}]
  %s3 = sld [smem:[#allocation0]]
  $region26: #{tpu_custom_call.1} parent=0
    _
  %s5 = ssub.s32 1, %s3
  %s6 = scalar_select 0, %s5, %s3
  $region1: #{tpu_custom_call.1} parent=0
    #allocation2 [shape = 'u8[8192]{0}', space=vmem, size = 0x2000, scoped, tag = 'input window, operand 0, single buffered']
    #allocation3 [shape = 's32[1]{0}', space=sflag, size = 0x4, scoped, tag = 'scoped memory for tpu_custom_call.1']
    #allocation4 [shape = 's32[1]{0}', space=sflag, size = 0x4, scoped, tag = 'scoped memory for tpu_custom_call.1']
    #allocation5 [shape = 'u8[65536]{0}', space=vmem, size = 0x10000, scoped, tag = 'input window, operand 1, single buffered']
    #allocation6 [shape = 's32[1]{0}', space=sflag, size = 0x4, scoped, tag = 'scoped memory for tpu_custom_call.1']
    #allocation7 [shape = 'u8[8192]{0}', space=vmem, size = 0x2000, scoped, tag = 'output window, operand 0, single buffered']
    %7 = vsyncpa [#allocation3], 0
    %8 = vsyncpa [#allocation6], 0
    %9 = vsyncpa [#allocation4], 0
    // Predicated region
    $region2: #{tpu_custom_call.1} parent=1 // pred_check
      _
    $region3: #{tpu_custom_call.1} parent=1 // pred_check_branch
      %11 = sbr.rel (0) target = $region5
    $region4: #{tpu_custom_call.1} parent=1 // pred_region
      %s13 = ssub.s32 256, 256
      %14 = vsyncadd [#allocation3], %s13
      %s15 = sshll.u32 [#allocation2], 4
      %s16 = int_to_ptr.vmem [resolvable:$true] %s15
      %21 = dma.hbm_to_vmem [thread:$0]  %s0, 256, %s16, [#allocation3], 128, 128, 8
    $region5: #{tpu_custom_call.1} parent=1 // pred_fallthru
      _
    // Predicated region
    $region6: #{tpu_custom_call.1} parent=1 // pred_check
      _
    $region7: #{tpu_custom_call.1} parent=1 // pred_check_branch
      %23 = sbr.rel (0) target = $region9
    $region8: #{tpu_custom_call.1} parent=1 // pred_region
      %s25 = ssub.s32 2048, 2048
      %26 = vsyncadd [#allocation6], %s25
      %s27 = sshll.u32 [#allocation5], 4
      %s28 = int_to_ptr.vmem [resolvable:$true] %s27
      %33 = dma.hbm_to_vmem [thread:$0]  %s1, 2048, %s28, [#allocation6], 128, 128, 8
    $region9: #{tpu_custom_call.1} parent=1 // pred_fallthru
      _
    // Predicated region
    $region10: #{tpu_custom_call.1} parent=1 // pred_check
      _
    $region11: #{tpu_custom_call.1} parent=1 // pred_check_branch
      %35 = sbr.rel (0) target = $region13
    $region12: #{tpu_custom_call.1} parent=1 // pred_region
      %36 = dma.done [#allocation3], 256
    $region13: #{tpu_custom_call.1} parent=1 // pred_fallthru
      _
    // Predicated region
    $region14: #{tpu_custom_call.1} parent=1 // pred_check
      _
    $region15: #{tpu_custom_call.1} parent=1 // pred_check_branch
      %38 = sbr.rel (0) target = $region17
    $region16: #{tpu_custom_call.1} parent=1 // pred_region
      %39 = dma.done [#allocation6], 2048
    $region17: #{tpu_custom_call.1} parent=1 // pred_fallthru
      _
    %v40 = vld [vmem:[#allocation2] sm:$0xff]
    %v41 = vld [vmem:[#allocation2 + $0x8] sm:$0xff]
    %v42 = vld [vmem:[#allocation5] sm:$0xff]
    %v43 = vld [vmem:[#allocation5 + $0x8] sm:$0xff]
    %v44 = vld [vmem:[#allocation5 + $0x10] sm:$0xff]
    %v45 = vld [vmem:[#allocation5 + $0x18] sm:$0xff]
    %v46 = vld [vmem:[#allocation5 + $0x20] sm:$0xff]
    %v47 = vld [vmem:[#allocation5 + $0x28] sm:$0xff]
    %v48 = vld [vmem:[#allocation5 + $0x30] sm:$0xff]
    %v49 = vld [vmem:[#allocation5 + $0x38] sm:$0xff]
    %v50 = vld [vmem:[#allocation5 + $0x40] sm:$0xff]
    %v51 = vld [vmem:[#allocation5 + $0x48] sm:$0xff]
    %v52 = vld [vmem:[#allocation5 + $0x50] sm:$0xff]
    %v53 = vld [vmem:[#allocation5 + $0x58] sm:$0xff]
    %v54 = vld [vmem:[#allocation5 + $0x60] sm:$0xff]
    %v55 = vld [vmem:[#allocation5 + $0x68] sm:$0xff]
    %v56 = vld [vmem:[#allocation5 + $0x70] sm:$0xff]
    %v57 = vld [vmem:[#allocation5 + $0x78] sm:$0xff]
    %58 = vmatprep.subr.mxu0 0.0
    %59 = vmatpush1.xpose.msra.mxu0 %v42
    %60 = vmatprep.subr.mxu0 0.0
    %61 = vmatpush1.xpose.msra.mxu0 %v43
    %62 = vmatprep.subr.mxu0 0.0
    %63 = vmatpush1.xpose.msra.mxu0 %v44
    %64 = vmatprep.subr.mxu0 0.0
    %65 = vmatpush1.xpose.msra.mxu0 %v45
    %66 = vmatprep.subr.mxu0 0.0
    %67 = vmatpush1.xpose.msra.mxu0 %v46
    %68 = vmatprep.subr.mxu0 0.0
    %69 = vmatpush1.xpose.msra.mxu0 %v47
    %70 = vmatprep.subr.mxu0 0.0
    %71 = vmatpush1.xpose.msra.mxu0 %v48
    %72 = vmatprep.subr.mxu0 0.0
    %73 = vmatpush1.xpose.msra.mxu0 %v49
    %74 = vmatprep.subr.mxu0 0.0
    %75 = vmatpush1.xpose.msra.mxu0 %v50
    %76 = vmatprep.subr.mxu0 0.0
    %77 = vmatpush1.xpose.msra.mxu0 %v51
    %78 = vmatprep.subr.mxu0 0.0
    %79 = vmatpush1.xpose.msra.mxu0 %v52
    %80 = vmatprep.subr.mxu0 0.0
    %81 = vmatpush1.xpose.msra.mxu0 %v53
    %82 = vmatprep.subr.mxu0 0.0
    %83 = vmatpush1.xpose.msra.mxu0 %v54
    %84 = vmatprep.subr.mxu0 0.0
    %85 = vmatpush1.xpose.msra.mxu0 %v55
    %86 = vmatprep.subr.mxu0 0.0
    %87 = vmatpush1.xpose.msra.mxu0 %v56
    %88 = vmatprep.subr.mxu0 0.0
    %89 = vmatpush1.xpose.msra.mxu0 %v57
    %90 = vmatprep.subr.mxu0 0.0
    %91 = vmatpush1.xpose.msra.mxu0 0.0
    %92 = vmatprep.subr.mxu0 0.0
    %93 = vmatpush1.xpose.msra.mxu0 0.0
    %94 = vmatprep.subr.mxu0 0.0
    %95 = vmatpush1.xpose.msra.mxu0 0.0
    %96 = vmatprep.subr.mxu0 0.0
    %97 = vmatpush1.xpose.msra.mxu0 0.0
    %98 = vmatprep.subr.mxu0 0.0
    %99 = vmatpush1.xpose.msra.mxu0 0.0
    %100 = vmatprep.subr.mxu0 0.0
    %101 = vmatpush1.xpose.msra.mxu0 0.0
    %102 = vmatprep.subr.mxu0 0.0
    %103 = vmatpush1.xpose.msra.mxu0 0.0
    %104 = vmatprep.subr.mxu0 0.0
    %105 = vmatpush1.xpose.msra.mxu0 0.0
    %106 = vmatprep.subr.mxu0 0.0
    %107 = vmatpush1.xpose.msra.mxu0 0.0
    %108 = vmatprep.subr.mxu0 0.0
    %109 = vmatpush1.xpose.msra.mxu0 0.0
    %110 = vmatprep.subr.mxu0 0.0
    %111 = vmatpush1.xpose.msra.mxu0 0.0
    %112 = vmatprep.subr.mxu0 0.0
    %113 = vmatpush1.xpose.msra.mxu0 0.0
    %114 = vmatprep.subr.mxu0 0.0
    %115 = vmatpush1.xpose.msra.mxu0 0.0
    %116 = vmatprep.subr.mxu0 0.0
    %117 = vmatpush1.xpose.msra.mxu0 0.0
    %118 = vmatprep.subr.mxu0 0.0
    %119 = vmatpush1.xpose.msra.mxu0 0.0
    %120 = vmatprep.subr.mxu0 0.0
    %121 = vmatpush1.xpose.msra.mxu0 0.0
    %122 = vmatprep.mubr.f32.mxu0 0.0
    %123 = vmatmul.mubr.f32.gmra.mrb[0].mxu0 %v40
    %v124 = vpop.f32.mrb[0].mxu0
    %v125 = vadd.f32 0.0, %v124
    %v126 = vpop.f32.mrb[0].mxu0
    %127 = vmatprep.mubr.f32.mxu0 0.0
    %128 = vmatmul.mubr.f32.gmra.mrb[0].mxu0 %v41
    %v129 = vpop.f32.mrb[0].mxu0
    %v130 = vadd.f32 0.0, %v129
    %v131 = vpop.f32.mrb[0].mxu0
    %132 = vdwg.mxu0
    %v133 = vmul.f32 %v125, 30.0
    %v134 = vmul.f32 %v130, 30.0
    %v135 = vand.u32 2147483647, %v133
    %vm136 = vcmp.le.f32.partialorder %v135, 0.7853982
    %vm137 = vcmp.lt.s32.totalorder %v133, 0
    %v138 = vand.u32 %v133, 2139095040
    %v139 = vshrl.u32 %v138, 23
    %v140 = vsub.s32 %v139, 127
    %v141 = vand.u32 2147483647, %v133
    %v142 = vand.u32 %v141, 8388607
    %v143 = vor.u32 %v142, 8388608
    %v144 = vsub.s32 0, %v143
    %v145 = vadd.s32 %v140, 1
    %vm146 = vcmp.gt.s32.totalorder %v145, 0
    %v147 = vsel %vm146, %v145, 0
    %v148 = vshrl.u32 %v147, 5
    %v149 = vand.u32 %v147, 31
    %v150 = vsub.s32 32, %v149
    %v151 = vshrl.u32 683565275, %v150
    %v152 = vshll.u32 683565275, %v149
    %v153 = vshrl.u32 2475754826, %v150
    %v154 = vor.u32 %v152, %v153
    %v155 = vshll.u32 2475754826, %v149
    %v156 = vshrl.u32 2131351028, %v150
    %v157 = vor.u32 %v155, %v156
    %v158 = vshll.u32 2131351028, %v149
    %v159 = vshrl.u32 2102212464, %v150
    %v160 = vor.u32 %v158, %v159
    %v161 = vshll.u32 2102212464, %v149
    %v162 = vshrl.u32 920167782, %v150
    %v163 = vor.u32 %v161, %v162
    %v164 = vshll.u32 920167782, %v149
    %v165 = vshrl.u32 1326507024, %v150
    %v166 = vor.u32 %v164, %v165
    %vm167 = vcmp.lt.s32.totalorder %v148, 1
    %vm168 = vcmp.lt.s32.totalorder %v148, 2
    %vm169 = vcmp.lt.s32.totalorder %v148, 3
    %vm170 = vcmp.lt.s32.totalorder %v148, 4
    %v171 = vsel %vm167, %v151, %v154
    %v172 = vsel %vm170, %v160, 2102212464
    %v173 = vsel %vm169, %v157, %v172
    %v174 = vsel %vm168, %v171, %v173
    %v175 = vsel %vm167, %v154, %v157
    %v176 = vsel %vm170, %v163, 920167782
    %v177 = vsel %vm169, %v160, %v176
    %v178 = vsel %vm168, %v175, %v177
    %v179 = vsel %vm167, %v157, %v160
    %v180 = vsel %vm170, %v166, 1326507024
    %v181 = vsel %vm169, %v163, %v180
    %v182 = vsel %vm168, %v179, %v181
    %v183 = vshll.u32 %v143, 8
    %v184 = vmul.u32.u64.compose %v183, %v182
    %v185 = vextract.low.u32 %v184
    %v186 = vextract.high.u32 %v184
    %v187 = vmul.u32.u64.compose %v183, %v178
    %v188 = vextract.low.u32 %v187
    %v189 = vextract.high.u32 %v187
    %v190 = vmul.u32 %v183, %v174
    %v191 = vadd.s32 %v186, %v188
    %vm192 = vc.u32 %v186, %v188
    %v193 = vadd.s32 %v189, 1
    %v194 = vsel %vm192, %v193, %v189
    %v195 = vadd.s32 %v190, %v194
    %v196 = vadd.s32 %v195, 536870912
    %v197 = vshrl.u32 %v196, 30
    %v198 = vshll.u32 %v197, 30
    %v199 = vsub.s32 %v195, %v198
    %vm200 = vcmp.lt.s32.totalorder %v199, 0
    %v201 = vsub.s32 0, %v199
    %v202 = vsel %vm200, %v201, %v199
    %v203 = vclz %v202
    %v204 = vsub.s32 %v203, 2
    %vm205 = vcmp.gt.s32.totalorder 0, %v204
    %v206 = vsel %vm205, 0, %v204
    %v207 = vsub.s32 32, %v206
    %v208 = vshll.u32 %v199, %v206
    %v209 = vshrl.u32 %v191, %v207
    %v210 = vor.u32 %v208, %v209
    %v211 = vsub.s32 4294967266, %v206
    %v212 = vadd.s32 %v211, 127
    %v213 = vshll.u32 %v212, 23
    %v214 = vor.u32 4788187, %v213
    %v215 = vand.u32 2147483647, %v214
    %v217 = vcvt.s32.f32 %v210
    %v218 = vmul.f32 %v217, %v215
    %v219 = vxor.u32 %v218, 2147483648
    %v220 = vsel %vm137, %v219, %v218
    %v221 = vsub.s32 4, %v197
    %v222 = vsel %vm137, %v221, %v197
    %v223 = vsel %vm136, %v133, %v220
    %v224 = vsel %vm136, 0, %v222
    %v225 = vcosq.f32.pop %v223
    %v226 = vsinq.f32.pop %v223
    %vm227 = vweird.f32 %v133
    %v228 = vadd.s32 %v224, 3
    %v229 = vand.u32 %v228, 3
    %vm230 = vcmp.lt.s32.totalorder %v229, 2
    %vm231 = vcmp.eq.s32.totalorder %v229, 0
    %v232 = vxor.u32 %v226, 2147483648
    %v233 = vsel %vm231, %v225, %v232
    %vm234 = vcmp.eq.s32.totalorder %v229, 2
    %v235 = vxor.u32 %v225, 2147483648
    %v236 = vsel %vm234, %v235, %v226
    %v237 = vsel %vm230, %v233, %v236
    %v238 = vsel %vm227, nan, %v237
    %v239 = vand.u32 2147483647, %v134
    %vm240 = vcmp.le.f32.partialorder %v239, 0.7853982
    %vm241 = vcmp.lt.s32.totalorder %v134, 0
    %v242 = vand.u32 %v134, 2139095040
    %v243 = vshrl.u32 %v242, 23
    %v244 = vsub.s32 %v243, 127
    %v245 = vand.u32 2147483647, %v134
    %v246 = vand.u32 %v245, 8388607
    %v247 = vor.u32 %v246, 8388608
    %v248 = vsub.s32 0, %v247
    %v249 = vadd.s32 %v244, 1
    %vm250 = vcmp.gt.s32.totalorder %v249, 0
    %v251 = vsel %vm250, %v249, 0
    %v252 = vshrl.u32 %v251, 5
    %v253 = vand.u32 %v251, 31
    %v254 = vsub.s32 32, %v253
    %v255 = vshrl.u32 683565275, %v254
    %v256 = vshll.u32 683565275, %v253
    %v257 = vshrl.u32 2475754826, %v254
    %v258 = vor.u32 %v256, %v257
    %v259 = vshll.u32 2475754826, %v253
    %v260 = vshrl.u32 2131351028, %v254
    %v261 = vor.u32 %v259, %v260
    %v262 = vshll.u32 2131351028, %v253
    %v263 = vshrl.u32 2102212464, %v254
    %v264 = vor.u32 %v262, %v263
    %v265 = vshll.u32 2102212464, %v253
    %v266 = vshrl.u32 920167782, %v254
    %v267 = vor.u32 %v265, %v266
    %v268 = vshll.u32 920167782, %v253
    %v269 = vshrl.u32 1326507024, %v254
    %v270 = vor.u32 %v268, %v269
    %vm271 = vcmp.lt.s32.totalorder %v252, 1
    %vm272 = vcmp.lt.s32.totalorder %v252, 2
    %vm273 = vcmp.lt.s32.totalorder %v252, 3
    %vm274 = vcmp.lt.s32.totalorder %v252, 4
    %v275 = vsel %vm271, %v255, %v258
    %v276 = vsel %vm274, %v264, 2102212464
    %v277 = vsel %vm273, %v261, %v276
    %v278 = vsel %vm272, %v275, %v277
    %v279 = vsel %vm271, %v258, %v261
    %v280 = vsel %vm274, %v267, 920167782
    %v281 = vsel %vm273, %v264, %v280
    %v282 = vsel %vm272, %v279, %v281
    %v283 = vsel %vm271, %v261, %v264
    %v284 = vsel %vm274, %v270, 1326507024
    %v285 = vsel %vm273, %v267, %v284
    %v286 = vsel %vm272, %v283, %v285
    %v287 = vshll.u32 %v247, 8
    %v288 = vmul.u32.u64.compose %v287, %v286
    %v289 = vextract.low.u32 %v288
    %v290 = vextract.high.u32 %v288
    %v291 = vmul.u32.u64.compose %v287, %v282
    %v292 = vextract.low.u32 %v291
    %v293 = vextract.high.u32 %v291
    %v294 = vmul.u32 %v287, %v278
    %v295 = vadd.s32 %v290, %v292
    %vm296 = vc.u32 %v290, %v292
    %v297 = vadd.s32 %v293, 1
    %v298 = vsel %vm296, %v297, %v293
    %v299 = vadd.s32 %v294, %v298
    %v300 = vadd.s32 %v299, 536870912
    %v301 = vshrl.u32 %v300, 30
    %v302 = vshll.u32 %v301, 30
    %v303 = vsub.s32 %v299, %v302
    %vm304 = vcmp.lt.s32.totalorder %v303, 0
    %v305 = vsub.s32 0, %v303
    %v306 = vsel %vm304, %v305, %v303
    %v307 = vclz %v306
    %v308 = vsub.s32 %v307, 2
    %vm309 = vcmp.gt.s32.totalorder 0, %v308
    %v310 = vsel %vm309, 0, %v308
    %v311 = vsub.s32 32, %v310
    %v312 = vshll.u32 %v303, %v310
    %v313 = vshrl.u32 %v295, %v311
    %v314 = vor.u32 %v312, %v313
    %v315 = vsub.s32 4294967266, %v310
    %v316 = vadd.s32 %v315, 127
    %v317 = vshll.u32 %v316, 23
    %v318 = vor.u32 4788187, %v317
    %v319 = vand.u32 2147483647, %v318
    %v321 = vcvt.s32.f32 %v314
    %v322 = vmul.f32 %v321, %v319
    %v323 = vxor.u32 %v322, 2147483648
    %v324 = vsel %vm241, %v323, %v322
    %v325 = vsub.s32 4, %v301
    %v326 = vsel %vm241, %v325, %v301
    %v327 = vsel %vm240, %v134, %v324
    %v328 = vsel %vm240, 0, %v326
    %v329 = vcosq.f32.pop %v327
    %v330 = vsinq.f32.pop %v327
    %vm331 = vweird.f32 %v134
    %v332 = vadd.s32 %v328, 3
    %v333 = vand.u32 %v332, 3
    %vm334 = vcmp.lt.s32.totalorder %v333, 2
    %vm335 = vcmp.eq.s32.totalorder %v333, 0
    %v336 = vxor.u32 %v330, 2147483648
    %v337 = vsel %vm335, %v329, %v336
    %vm338 = vcmp.eq.s32.totalorder %v333, 2
    %v339 = vxor.u32 %v329, 2147483648
    %v340 = vsel %vm338, %v339, %v330
    %v341 = vsel %vm334, %v337, %v340
    %v342 = vsel %vm331, nan, %v341
    %343 = vst [vmem:[#allocation7] sm:$0xff] %v238
    %344 = vst [vmem:[#allocation7 + $0x8] sm:$0xff] %v342
    // Predicated region
    $region18: #{tpu_custom_call.1} parent=1 // pred_check
      _
    $region19: #{tpu_custom_call.1} parent=1 // pred_check_branch
      %346 = sbr.rel (0) target = $region21
    $region20: #{tpu_custom_call.1} parent=1 // pred_region
      %s348 = ssub.s32 256, 256
      %349 = vsyncadd [#allocation4], %s348
      %s350 = sshll.u32 [#allocation7], 4
      %s351 = int_to_ptr.vmem [resolvable:$true] %s350
      %356 = dma.vmem_to_hbm [thread:$0]  %s351, 256, %s2, [#allocation4], 128, 128, 8
    $region21: #{tpu_custom_call.1} parent=1 // pred_fallthru
      _
    // Predicated region
    $region22: #{tpu_custom_call.1} parent=1 // pred_check
      _
    $region23: #{tpu_custom_call.1} parent=1 // pred_check_branch
      %358 = sbr.rel (0) target = $region25
    $region24: #{tpu_custom_call.1} parent=1 // pred_region
      %359 = dma.done [#allocation4], 256
    $region25: #{tpu_custom_call.1} parent=1 // pred_fallthru
      _
    %360 = vsyncpa [#allocation3], 1
    %361 = vsyncpa [#allocation6], 1
    %362 = vsyncpa [#allocation4], 1

</llo_original>
